<compile_context>
chip_gen: v5e
topology: v5e:2x2
jax: 0.10.0
libtpu: 0.0.40
codegen_flags: <defaults>
</compile_context>

<pallas_src>
import math
import functools

import jax
import jax.numpy as jnp
from jax import lax
from jax.experimental import pallas as pl
from jax.experimental.pallas import tpu as pltpu


# ----------------------------- tiling helper ------------------------------- #

def _pick_tile(n, candidates):
    """Largest candidate that evenly divides n, else the full dim (always legal)."""
    for c in candidates:
        if n >= c and n % c == 0:
            return c
    return n


# ------------------------------ RMSNorm kernel ------------------------------ #

def _rmsnorm_kernel(x_ref, w_ref, o_ref, *, eps):
    x = x_ref[...].astype(jnp.float32)
    ms = jnp.mean(x * x, axis=-1, keepdims=True)
    o = x * lax.rsqrt(ms + eps) * w_ref[...].astype(jnp.float32)
    o_ref[...] = o.astype(o_ref.dtype)


def pallas_rmsnorm(x2d, w_row, eps, out_dtype=jnp.bfloat16):
    """x2d: (M, dim) f32, w_row: (1, dim) f32 -> (M, dim) bf16."""
    M, dim = x2d.shape
    tm = _pick_tile(M, (256, 128))
    kernel = functools.partial(_rmsnorm_kernel, eps=eps)
    return pl.pallas_call(
        kernel,
        out_shape=jax.ShapeDtypeStruct((M, dim), out_dtype),
        grid=(M // tm,),
        in_specs=[
            pl.BlockSpec((tm, dim), lambda i: (i, 0)),
            pl.BlockSpec((1, dim), lambda i: (0, 0)),
        ],
        out_specs=pl.BlockSpec((tm, dim), lambda i: (i, 0)),
        compiler_params=pltpu.CompilerParams(dimension_semantics=("parallel",)),
    )(x2d, w_row)


# ------------------------------ tiled matmul -------------------------------- #

def _matmul_kernel(x_ref, w_ref, o_ref, acc_ref):
    @pl.when(pl.program_id(2) == 0)
    def _init():
        acc_ref[...] = jnp.zeros_like(acc_ref)

    acc_ref[...] += jnp.dot(x_ref[...], w_ref[...],
                            preferred_element_type=jnp.float32)

    @pl.when(pl.program_id(2) == pl.num_programs(2) - 1)
    def _finalize():
        o_ref[...] = acc_ref[...].astype(o_ref.dtype)


def pallas_matmul(x, w, out_dtype=jnp.float32):
    """x: (M, K) bf16, w: (K, N) bf16 -> (M, N) out_dtype (f32 accumulation)."""
    M, K = x.shape
    _, N = w.shape
    tm = _pick_tile(M, (256, 128))
    tn = _pick_tile(N, (256, 128))
    tk = _pick_tile(K, (512, 256, 128))
    return pl.pallas_call(
        _matmul_kernel,
        out_shape=jax.ShapeDtypeStruct((M, N), out_dtype),
        grid=(M // tm, N // tn, K // tk),
        in_specs=[
            pl.BlockSpec((tm, tk), lambda i, j, l: (i, l)),
            pl.BlockSpec((tk, tn), lambda i, j, l: (l, j)),
        ],
        out_specs=pl.BlockSpec((tm, tn), lambda i, j, l: (i, j)),
        scratch_shapes=[pltpu.VMEM((tm, tn), jnp.float32)],
        compiler_params=pltpu.CompilerParams(
            dimension_semantics=("parallel", "parallel", "arbitrary")),
    )(x, w)


# ----------- SwiGLU + second residual fused into the down-projection -------- #

def _swiglu_matmul_kernel(h1_ref, h3_ref, w_ref, res_ref, o_ref, acc_ref):
    @pl.when(pl.program_id(2) == 0)
    def _init():
        acc_ref[...] = jnp.zeros_like(acc_ref)

    h1 = h1_ref[...].astype(jnp.float32)
    h3 = h3_ref[...].astype(jnp.float32)
    lhs = (h1 * jax.nn.sigmoid(h1) * h3).astype(jnp.bfloat16)   # silu(h1) * h3
    acc_ref[...] += jnp.dot(lhs, w_ref[...],
                            preferred_element_type=jnp.float32)

    @pl.when(pl.program_id(2) == pl.num_programs(2) - 1)
    def _finalize():
        # out = h + FFN(ffn_norm(h))  (residual fused here)
        o_ref[...] = (acc_ref[...] + res_ref[...].astype(jnp.float32)).astype(o_ref.dtype)


def pallas_swiglu_matmul(h13, w2, res, out_dtype=jnp.float32):
    """h13: (M, 2F) bf16 (= [w1(x) | w3(x)]), w2: (F, N) bf16, res: (M, N) f32
    -> (M, N) = res + (silu(h1)*h3) @ w2."""
    M, twoF = h13.shape
    F = twoF // 2
    _, N = w2.shape
    tm = _pick_tile(M, (256, 128))
    tn = _pick_tile(N, (256, 128))
    tk = _pick_tile(F, (512, 256, 128))
    koff = F // tk
    return pl.pallas_call(
        _swiglu_matmul_kernel,
        out_shape=jax.ShapeDtypeStruct((M, N), out_dtype),
        grid=(M // tm, N // tn, F // tk),
        in_specs=[
            pl.BlockSpec((tm, tk), lambda i, j, l: (i, l)),          # w1(x) half
            pl.BlockSpec((tm, tk), lambda i, j, l: (i, l + koff)),   # w3(x) half
            pl.BlockSpec((tk, tn), lambda i, j, l: (l, j)),
            pl.BlockSpec((tm, tn), lambda i, j, l: (i, j)),          # residual h
        ],
        out_specs=pl.BlockSpec((tm, tn), lambda i, j, l: (i, j)),
        scratch_shapes=[pltpu.VMEM((tm, tn), jnp.float32)],
        compiler_params=pltpu.CompilerParams(
            dimension_semantics=("parallel", "parallel", "arbitrary")),
    )(h13, h13, w2, res)


# ------- flash attention (RoPE + GQA + residual + ffn_norm all fused) -------- #

def _flash_attn_kernel(x_ref, q_ref, k_ref, v_ref, cq_ref, sq_ref, ck_ref, sk_ref,
                       wffn_ref, h_ref, hn_ref,
                       m_ref, l_ref, acc_ref, qrot_ref,
                       *, n_heads, n_kv_heads, head_dim, tq, tk, scale, eps):
    n_rep = n_heads // n_kv_heads
    hd = head_dim
    half = hd // 2

    qi = pl.program_id(1)
    ki = pl.program_id(2)
    nk = pl.num_programs(2)

    @pl.when(ki == 0)
    def _init():
        m_ref[...] = jnp.full_like(m_ref, -jnp.inf)
        l_ref[...] = jnp.zeros_like(l_ref)
        acc_ref[...] = jnp.zeros_like(acc_ref)
        # RoPE on Q done ONCE per query tile, reused across every KV tile.
        cq = cq_ref[...]
        sq = sq_ref[...]
        for h in range(n_heads):
            qa = q_ref[:, h * hd:h * hd + half].astype(jnp.float32)
            qb = q_ref[:, h * hd + half:(h + 1) * hd].astype(jnp.float32)
            qrot_ref[:, h * hd:h * hd + half] = (qa * cq - qb * sq).astype(jnp.bfloat16)
            qrot_ref[:, h * hd + half:(h + 1) * hd] = (qa * sq + qb * cq).astype(jnp.bfloat16)

    # Causal skip: this KV tile contributes only if its first column is <= the
    # last row of the current query tile.
    @pl.when(ki * tk <= qi * tq + (tq - 1))
    def _compute():
        row = qi * tq + lax.broadcasted_iota(jnp.int32, (tq, tk), 0)
        col = ki * tk + lax.broadcasted_iota(jnp.int32, (tq, tk), 1)
        causal = row >= col

        ck = ck_ref[...]
        sk = sk_ref[...]
        nt = (((1,), (1,)), ((), ()))   # contract last dims (no explicit .T)

        for g in range(n_kv_heads):
            # RoPE on the K tile (half-split convention; weights were permuted).
            ka = k_ref[:, g * hd:g * hd + half].astype(jnp.float32)
            kb = k_ref[:, g * hd + half:(g + 1) * hd].astype(jnp.float32)
            ka_r = (ka * ck - kb * sk).astype(jnp.bfloat16)
            kb_r = (ka * sk + kb * ck).astype(jnp.bfloat16)
            v_g = v_ref[:, g * hd:(g + 1) * hd].astype(jnp.bfloat16)

            # Each K/V tile is rotated once and reused by all n_rep query heads.
            for r in range(n_rep):
                h = g * n_rep + r
                qa_r = qrot_ref[:, h * hd:h * hd + half]
                qb_r = qrot_ref[:, h * hd + half:(h + 1) * hd]

                s = lax.dot_general(qa_r, ka_r, nt,
                                    preferred_element_type=jnp.float32)
                s = s + lax.dot_general(qb_r, kb_r, nt,
                                        preferred_element_type=jnp.float32)
                s = s * scale
                s = jnp.where(causal, s, -1e30)

                m_prev = m_ref[h]                                   # (tq, 1)
                m_new = jnp.maximum(m_prev, jnp.max(s, axis=-1, keepdims=True))
                alpha = jnp.exp(m_prev - m_new)
                p = jnp.exp(s - m_new)                              # (tq, tk)

                l_ref[h] = alpha * l_ref[h] + jnp.sum(p, axis=-1, keepdims=True)
                pv = jnp.dot(p.astype(jnp.bfloat16), v_g,
                             preferred_element_type=jnp.float32)    # (tq, hd)
                acc_ref[:, h * hd:(h + 1) * hd] = (
                    alpha * acc_ref[:, h * hd:(h + 1) * hd] + pv)
                m_ref[h] = m_new

    @pl.when(ki == nk - 1)
    def _finalize():
        # Normalize per head in VMEM scratch, then write h = x + attn and
        # hn = ffn_norm(h) as full lane-dense slabs.
        for h in range(n_heads):
            inv = pl.reciprocal(l_ref[h], approx=True)              # (tq, 1)
            acc_ref[:, h * hd:(h + 1) * hd] = acc_ref[:, h * hd:(h + 1) * hd] * inv
        hf = x_ref[...].astype(jnp.float32) + acc_ref[...]          # (tq, dim)
        h_ref[...] = hf.astype(h_ref.dtype)
        ms = jnp.mean(hf * hf, axis=-1, keepdims=True)
        hn_ref[...] = (hf * lax.rsqrt(ms + eps)
                       * wffn_ref[...].astype(jnp.float32)).astype(hn_ref.dtype)


def pallas_flash_attention(x2d, qkv, cos, sin, ffn_w, n_heads, n_kv_heads,
                           head_dim, B, S, eps):
    """x2d: (B*S, dim) f32 residual, qkv: (B*S, HD+2*KD) bf16 fused projection,
    cos/sin: (S, head_dim/2) f32, ffn_w: (1, dim) f32.
    Returns (h, hn): h = x + attn (f32), hn = ffn_norm(h) (bf16), both (B*S, dim).
    Q/K/V are read directly as column views of qkv (no slice copies)."""
    M, dim = x2d.shape
    HD = n_heads * head_dim
    KD = n_kv_heads * head_dim
    n_rep = n_heads // n_kv_heads
    assert HD == dim and qkv.shape == (M, HD + 2 * KD)
    # Column-view blocks require lane-aligned widths (true for Llama configs).
    assert HD % KD == 0
    half = head_dim // 2
    tq = _pick_tile(S, (256, 128))
    tk = _pick_tile(S, (256, 128))
    nq = S // tq
    nkb = S // tk

    def kv_block(qi, ki):
        # Clamp to the last causally-needed KV tile: skipped (upper-triangle)
        # steps keep the same block index, so Pallas never re-DMAs them.
        last = (qi * tq + tq - 1) // tk
        return jnp.minimum(ki, last)

    kernel = functools.partial(
        _flash_attn_kernel, n_heads=n_heads, n_kv_heads=n_kv_heads,
        head_dim=head_dim, tq=tq, tk=tk,
        scale=1.0 / math.sqrt(head_dim), eps=eps)

    h, hn = pl.pallas_call(
        kernel,
        out_shape=(jax.ShapeDtypeStruct((M, dim), jnp.float32),
                   jax.ShapeDtypeStruct((M, dim), jnp.bfloat16)),
        grid=(B, nq, nkb),
        in_specs=[
            pl.BlockSpec((tq, dim), lambda b, qi, ki: (b * nq + qi, 0)),        # x residual
            pl.BlockSpec((tq, HD), lambda b, qi, ki: (b * nq + qi, 0)),         # Q cols of qkv
            pl.BlockSpec((tk, KD),
                         lambda b, qi, ki: (b * nkb + kv_block(qi, ki), n_rep)),      # K cols
            pl.BlockSpec((tk, KD),
                         lambda b, qi, ki: (b * nkb + kv_block(qi, ki), n_rep + 1)),  # V cols
            pl.BlockSpec((tq, half), lambda b, qi, ki: (qi, 0)),                # cos (Q rows)
            pl.BlockSpec((tq, half), lambda b, qi, ki: (qi, 0)),                # sin (Q rows)
            pl.BlockSpec((tk, half), lambda b, qi, ki: (kv_block(qi, ki), 0)),  # cos (K rows)
            pl.BlockSpec((tk, half), lambda b, qi, ki: (kv_block(qi, ki), 0)),  # sin (K rows)
            pl.BlockSpec((1, dim), lambda b, qi, ki: (0, 0)),                   # ffn_norm w
        ],
        out_specs=[
            pl.BlockSpec((tq, dim), lambda b, qi, ki: (b * nq + qi, 0)),        # h
            pl.BlockSpec((tq, dim), lambda b, qi, ki: (b * nq + qi, 0)),        # ffn_norm(h)
        ],
        scratch_shapes=[
            pltpu.VMEM((n_heads, tq, 1), jnp.float32),   # running max
            pltpu.VMEM((n_heads, tq, 1), jnp.float32),   # running denom
            pltpu.VMEM((tq, HD), jnp.float32),           # unnormalized output
            pltpu.VMEM((tq, HD), jnp.bfloat16),          # rotated Q (reused over KV tiles)
        ],
        compiler_params=pltpu.CompilerParams(
            dimension_semantics=("parallel", "parallel", "arbitrary")),
    )(x2d, qkv, qkv, qkv, cos, sin, cos, sin, ffn_w)
    return h, hn


# ------------------------------ JAX glue / prep ----------------------------- #

def precompute_rope(head_dim, seqlen, theta=500000.0):
    freqs = 1.0 / (theta ** (jnp.arange(0, head_dim, 2)[: head_dim // 2]
                             .astype(jnp.float32) / head_dim))
    t = jnp.arange(seqlen, dtype=jnp.float32)
    ang = jnp.outer(t, freqs)                       # (S, D/2)
    return jnp.cos(ang), jnp.sin(ang)


def permute_rope_weight(w, n_heads, head_dim):
    """Reorder each head's output columns from interleaved (x0,x1,x2,x3,...)
    to split halves (evens first, odds second) so the in-kernel half-rotation
    RoPE is exactly equivalent to the reference interleaved rotation."""
    in_dim = w.shape[0]
    w = w.reshape(in_dim, n_heads, head_dim // 2, 2)
    w = jnp.transpose(w, (0, 1, 3, 2))
    return w.reshape(in_dim, n_heads * head_dim)


def prepare_params(params, n_heads, n_kv_heads, head_dim):
    """One-time weight prep: RoPE column permutation, QKV / w1|w3 fusion, bf16 cast."""
    wq_p = permute_rope_weight(params["wq"], n_heads, head_dim)
    wk_p = permute_rope_weight(params["wk"], n_kv_heads, head_dim)
    return {
        "wqkv": jnp.concatenate([wq_p, wk_p, params["wv"]], axis=1).astype(jnp.bfloat16),
        "w13": jnp.concatenate([params["w1"], params["w3"]], axis=1).astype(jnp.bfloat16),
        "w2": params["w2"].astype(jnp.bfloat16),
        "attn_norm_w": params["attn_norm_w"].reshape(1, -1),
        "ffn_norm_w": params["ffn_norm_w"].reshape(1, -1),
    }


def transformer_block_forward(prep, x, cos, sin, n_heads, n_kv_heads, eps):
    B, S, dim = x.shape
    head_dim = dim // n_heads
    x2d = x.reshape(B * S, dim)

    # ---- h = x + Attention(attention_norm(x)) ----
    xn = pallas_rmsnorm(x2d, prep["attn_norm_w"], eps)                 # bf16
    qkv = pallas_matmul(xn, prep["wqkv"], out_dtype=jnp.bfloat16)      # fused QKV
    # Flash attention also fuses the residual add and ffn_norm(h).
    h2d, hn2d = pallas_flash_attention(x2d, qkv, cos, sin, prep["ffn_norm_w"],
                                       n_heads, n_kv_heads, head_dim, B, S, eps)
    # Reference computes wo(attn) but discards it and returns `attn` -> no wo here.

    # ---- out = h + FFN(ffn_norm(h)) ----
    h13 = pallas_matmul(hn2d, prep["w13"], out_dtype=jnp.bfloat16)     # fused w1|w3
    out2d = pallas_swiglu_matmul(h13, prep["w2"], h2d, out_dtype=jnp.float32)
    return out2d.reshape(B, S, dim)


# ------------------------------ pure-jnp reference -------------------------- #

def _rope_interleaved_ref(x, cos, sin):
    B, S, H, D = x.shape
    xr = x.astype(jnp.float32).reshape(B, S, H, D // 2, 2)
    x0, x1 = xr[..., 0], xr[..., 1]
    c = cos[None, :, None, :]
    s = sin[None, :, None, :]
    o0 = x0 * c - x1 * s
    o1 = x0 * s + x1 * c
    return jnp.stack([o0, o1], axis=-1).reshape(B, S, H, D)


def reference_block_forward(params, x, cos, sin, n_heads, n_kv_heads, eps):
    B, S, dim = x.shape
    D = dim // n_heads
    n_rep = n_heads // n_kv_heads

    def rmsnorm(v, w):
        vf = v.astype(jnp.float32)
        return vf * lax.rsqrt(jnp.mean(vf * vf, axis=-1, keepdims=True) + eps) * w

    xn = rmsnorm(x, params["attn_norm_w"])
    xq = (xn @ params["wq"]).reshape(B, S, n_heads, D)
    xk = (xn @ params["wk"]).reshape(B, S, n_kv_heads, D)
    xv = (xn @ params["wv"]).reshape(B, S, n_kv_heads, D)
    xq = _rope_interleaved_ref(xq, cos, sin)
    xk = _rope_interleaved_ref(xk, cos, sin)
    xk = jnp.repeat(xk, n_rep, axis=2)
    xv = jnp.repeat(xv, n_rep, axis=2)
    q = jnp.transpose(xq, (0, 2, 1, 3))
    k = jnp.transpose(xk, (0, 2, 1, 3))
    v = jnp.transpose(xv, (0, 2, 1, 3))
    scores = jnp.einsum("bhqd,bhkd->bhqk", q, k) / math.sqrt(D)
    mask = jnp.where(jnp.arange(S)[:, None] >= jnp.arange(S)[None, :],
                     jnp.float32(0.0), jnp.float32(-jnp.inf))
    scores = scores + mask[None, None]
    p = jax.nn.softmax(scores.astype(jnp.float32), axis=-1)
    attn = jnp.einsum("bhqk,bhkd->bhqd", p, v)
    attn = jnp.transpose(attn, (0, 2, 1, 3)).reshape(B, S, dim)
    h = x + attn                                   # wo result is discarded in reference
    hn = rmsnorm(h, params["ffn_norm_w"])
    h1 = hn @ params["w1"]
    h3 = hn @ params["w3"]
    ffn = (jax.nn.silu(h1) * h3) @ params["w2"]
    return h + ffn


# --------------------------------- main ------------------------------------- #

if __name__ == "__main__":
    # Small ModelArgs-consistent config (sized to exercise multi-tile attention
    # and lane-aligned Q/K/V column views: KD = 128, HD = 256).
    B, S, dim = 2, 512, 256
    n_heads, n_kv_heads = 4, 2
    head_dim = dim // n_heads          # 64
    multiple_of = 256
    eps = 1e-5
    theta = 500000.0
    hidden = int(2 * (4 * dim) / 3)
    hidden = multiple_of * ((hidden + multiple_of - 1) // multiple_of)   # 768

    key = jax.random.PRNGKey(0)
    ks = jax.random.split(key, 7)
    x = jax.random.normal(ks[0], (B, S, dim), dtype=jnp.float32)
    params = {
        "wq": 0.02 * jax.random.normal(ks[1], (dim, n_heads * head_dim), jnp.float32),
        "wk": 0.02 * jax.random.normal(ks[2], (dim, n_kv_heads * head_dim), jnp.float32),
        "wv": 0.02 * jax.random.normal(ks[3], (dim, n_kv_heads * head_dim), jnp.float32),
        # wo omitted: its result is discarded by the reference forward.
        "w1": 0.02 * jax.random.normal(ks[4], (dim, hidden), jnp.float32),
        "w3": 0.02 * jax.random.normal(ks[5], (dim, hidden), jnp.float32),
        "w2": 0.02 * jax.random.normal(ks[6], (hidden, dim), jnp.float32),
        "attn_norm_w": jnp.ones((dim,), jnp.float32),
        "ffn_norm_w": jnp.ones((dim,), jnp.float32),
    }

    cos, sin = precompute_rope(head_dim, S, theta)
    prep = prepare_params(params, n_heads, n_kv_heads, head_dim)

    out = transformer_block_forward(prep, x, cos, sin, n_heads, n_kv_heads, eps)
    out = jax.block_until_ready(out)

    ref = reference_block_forward(params, x, cos, sin, n_heads, n_kv_heads, eps)
    assert out.shape == (B, S, dim)
    max_err = jnp.max(jnp.abs(out - ref))
    assert jnp.allclose(out, ref, rtol=2e-2, atol=2e-2), f"mismatch vs ref: {max_err}"

    print("KERNEL_OK")
</pallas_src>

<mosaic_0001>
module attributes {stable_mosaic.version = 11 : i64} {
  func.func @_rmsnorm_kernel(%arg0: i32, %arg1: memref<256x256xf32, #tpu.memory_space<vmem>>, %arg2: memref<1x256xf32, #tpu.memory_space<vmem>>, %arg3: memref<256x256xbf16, #tpu.memory_space<vmem>>) attributes {dimension_semantics = [#tpu.dimension_semantics<parallel>], iteration_bounds = array<i64: 4>, scalar_prefetch = 0 : i64, scratch_operands = 0 : i64, tpu.core_type = #tpu.core_type<tc>, window_params = [{transform_indices = @transform_0, window_bounds = array<i64: 256, 256>}, {pipeline_mode = #tpu.pipeline_mode<synchronous>, transform_indices = @transform_1, window_bounds = array<i64: 1, 256>}, {transform_indices = @transform_2, window_bounds = array<i64: 256, 256>}]} {
    %c0 = arith.constant 0 : index
    %c0_0 = arith.constant 0 : index
    %0 = vector.load %arg1[%c0, %c0_0] : memref<256x256xf32, #tpu.memory_space<vmem>>, vector<256x256xf32>
    %1 = arith.mulf %0, %0 : vector<256x256xf32>
    %cst = arith.constant dense<0.000000e+00> : vector<256xf32>
    %2 = vector.multi_reduction <add>, %1, %cst [1] : vector<256x256xf32> to vector<256xf32>
    %3 = vector.shape_cast %2 : vector<256xf32> to vector<256x1xf32>
    %cst_1 = arith.constant 2.560000e+02 : f32
    %4 = vector.broadcast %cst_1 : f32 to vector<256x1xf32>
    %5 = arith.divf %3, %4 : vector<256x1xf32>
    %cst_2 = arith.constant 9.99999974E-6 : f32
    %6 = vector.broadcast %cst_2 : f32 to vector<256x1xf32>
    %7 = arith.addf %5, %6 : vector<256x1xf32>
    %8 = math.rsqrt %7 : vector<256x1xf32>
    %9 = vector.broadcast %8 : vector<256x1xf32> to vector<256x256xf32>
    %10 = arith.mulf %0, %9 : vector<256x256xf32>
    %c0_3 = arith.constant 0 : index
    %c0_4 = arith.constant 0 : index
    %11 = vector.load %arg2[%c0_3, %c0_4] : memref<1x256xf32, #tpu.memory_space<vmem>>, vector<1x256xf32>
    %12 = vector.broadcast %11 : vector<1x256xf32> to vector<256x256xf32>
    %13 = arith.mulf %10, %12 : vector<256x256xf32>
    %14 = arith.truncf %13 : vector<256x256xf32> to vector<256x256xbf16>
    %c0_5 = arith.constant 0 : index
    %c0_6 = arith.constant 0 : index
    %15 = vector.load %arg3[%c0_5, %c0_6] : memref<256x256xbf16, #tpu.memory_space<vmem>>, vector<256x256xbf16>
    tpu.vector_store %arg3[%c0_5, %c0_6], %14 {strides = array<i32>} : memref<256x256xbf16, #tpu.memory_space<vmem>>, vector<256x256xbf16>,
    return
  }
  func.func @transform_0(%arg0: i32) -> (i32, i32) {
    %c0_i32 = arith.constant 0 : i32
    %c0_i32_0 = arith.constant 0 : i32
    return %arg0, %c0_i32 : i32, i32
  }
  func.func @transform_1(%arg0: i32) -> (i32, i32) {
    %c0_i32 = arith.constant 0 : i32
    %c0_i32_0 = arith.constant 0 : i32
    %c0_i32_1 = arith.constant 0 : i32
    return %c0_i32, %c0_i32_0 : i32, i32
  }
  func.func @transform_2(%arg0: i32) -> (i32, i32) {
    %c0_i32 = arith.constant 0 : i32
    %c0_i32_0 = arith.constant 0 : i32
    return %arg0, %c0_i32 : i32, i32
  }
}

</mosaic_0001>

<llo_original>
// kernel: tpu_custom_call.1
$region0: #{tpu_custom_call.1}
  #allocation0 [shape = 'u32[]', space=smem, size = 0x4, offset = 0x4, fixed_abs, tag = 'smem constant byte address 0x4 - core index']
  #allocation1 [shape = 'u32[72,128]{1,0:T(1,128)}', space=vmem, size = 0x9000, scoped, tag = 'internal scratch']
  %s0 = inlined_call_operand.hbm [shape: f32[1024,256], index: 0, kind: input, shape index: {}]
  %s1 = inlined_call_operand.hbm [shape: f32[1,256], index: 1, kind: input, shape index: {}]
  %s2 = inlined_call_operand.hbm [shape: bf16[1024,256], index: 2, kind: output, shape index: {}]
  %s3 = sld [smem:[#allocation0]]
  $region49: #{tpu_custom_call.1} parent=0
    _
  %s5 = ssub.s32 1, %s3
  %s6 = scalar_select 0, %s5, %s3
  $region1: #{tpu_custom_call.1} parent=0
    #allocation2 [shape = 'u8[524288]{0}', space=vmem, size = 0x80000, scoped, tag = 'input window, operand 0']
    #allocation3 [shape = 's32[2]{0}', space=sflag, size = 0x8, scoped, tag = 'scoped memory for tpu_custom_call.1']
    #allocation4 [shape = 's32[2]{0}', space=sflag, size = 0x8, scoped, tag = 'scoped memory for tpu_custom_call.1']
    #allocation5 [shape = 'u8[1024]{0}', space=vmem, size = 0x400, scoped, tag = 'input window, operand 1, single buffered']
    #allocation6 [shape = 's32[1]{0}', space=sflag, size = 0x4, scoped, tag = 'scoped memory for tpu_custom_call.1']
    #allocation7 [shape = 'u8[262144]{0}', space=vmem, size = 0x40000, scoped, tag = 'output window, operand 0']
    %7 = vsyncpa [#allocation3], 0
    %s8 = scalar_lea.sflag [#allocation3], 1
    %9 = vsyncpa %s8, 0
    %10 = vsyncpa [#allocation6], 0
    %11 = vsyncpa [#allocation4], 0
    %s12 = scalar_lea.sflag [#allocation4], 1
    %13 = vsyncpa %s12, 0
    loop: start=0, step=1, limit=6
    $region2: #{tpu_custom_call.1} parent=1 // loop_pre_header
      _
    $region3: #{tpu_custom_call.1} parent=1 // loop_header
      %s15 = sphi 0, %s19
      %p16 = scmp.ge.s32.totalorder %s15, 6
      %s25 = sphi 0, %s27
      %s28 = sphi 0, %s25
      %s29 = sphi 0, %s28
      %s45 = sphi 0, %s29
      %s49 = sphi 0, %s49
      %s51 = sphi 0, %s49
      %s52 = sphi 0, %s51
      %s66 = sphi 0, %s52
      %s72 = sphi 0, %s74
      %s75 = sphi 0, %s72
      %s76 = sphi 0, %s75
      %s92 = sphi 0, %s76
    $region4: #{tpu_custom_call.1} parent=1 // loop_header_branch
      %18 = sbr.rel (%p16) target = $region8
    $region5: #{tpu_custom_call.1} parent=1 // loop_body
      %s20 = ssub.s32 %s15, 1
      %s21 = ssub.s32 %s15, 2
      %s22 = sadd.s32 %s15, 1
      %s23 = ssub.s32 %s15, %s22
      %p24 = scmp.eq.s32.totalorder %s23, 0
      %s26 = sadd.s32 %s25, 1
      %s27 = scalar_select %p24, %s25, %s26
      %p30 = pneg %p24
      %p31 = scmp.eq.s32.totalorder %s15, 3
      %p32 = por %p30, %p31
      %p33 = scmp.ne.s32.totalorder %s25, %s28
      %p34 = scmp.eq.s32.totalorder %s15, 0
      %p35 = por %p33, %p34
      %p36 = scmp.ne.s32.totalorder %s25, %s28
      %p37 = scmp.eq.s32.totalorder %s20, 3
      %p38 = por %p36, %p37
      %p39 = scmp.ne.s32.totalorder %s28, %s29
      %p40 = scmp.eq.s32.totalorder %s20, 0
      %p41 = por %p39, %p40
      %p42 = scmp.ne.s32.totalorder %s28, %s29
      %p43 = scmp.eq.s32.totalorder %s21, 3
      %p44 = por %p42, %p43
      %p46 = scmp.ne.s32.totalorder %s29, %s45
      %p47 = scmp.eq.s32.totalorder %s21, 0
      %p48 = por %p46, %p47
      %s50 = sadd.s32 %s49, 1
      %p53 = scmp.eq.s32.totalorder %s15, 3
      %p54 = scmp.ne.s32.totalorder %s49, %s51
      %p55 = scmp.eq.s32.totalorder %s15, 0
      %p56 = por %p54, %p55
      %p57 = scmp.ne.s32.totalorder %s49, %s51
      %p58 = scmp.eq.s32.totalorder %s20, 3
      %p59 = por %p57, %p58
      %p60 = scmp.ne.s32.totalorder %s51, %s52
      %p61 = scmp.eq.s32.totalorder %s20, 0
      %p62 = por %p60, %p61
      %p63 = scmp.ne.s32.totalorder %s51, %s52
      %p64 = scmp.eq.s32.totalorder %s21, 3
      %p65 = por %p63, %p64
      %p67 = scmp.ne.s32.totalorder %s52, %s66
      %p68 = scmp.eq.s32.totalorder %s21, 0
      %p69 = por %p67, %p68
      %s70 = ssub.s32 %s15, %s22
      %p71 = scmp.eq.s32.totalorder %s70, 0
      %s73 = sadd.s32 %s72, 1
      %s74 = scalar_select %p71, %s72, %s73
      %p77 = pneg %p71
      %p78 = scmp.eq.s32.totalorder %s15, 3
      %p79 = por %p77, %p78
      %p80 = scmp.ne.s32.totalorder %s72, %s75
      %p81 = scmp.eq.s32.totalorder %s15, 0
      %p82 = por %p80, %p81
      %p83 = scmp.ne.s32.totalorder %s72, %s75
      %p84 = scmp.eq.s32.totalorder %s20, 3
      %p85 = por %p83, %p84
      %p86 = scmp.ne.s32.totalorder %s75, %s76
      %p87 = scmp.eq.s32.totalorder %s20, 0
      %p88 = por %p86, %p87
      %p89 = scmp.ne.s32.totalorder %s75, %s76
      %p90 = scmp.eq.s32.totalorder %s21, 3
      %p91 = por %p89, %p90
      %p93 = scmp.ne.s32.totalorder %s76, %s92
      %p94 = scmp.eq.s32.totalorder %s21, 0
      %p95 = por %p93, %p94
      %p96 = scmp.le.s32.totalorder 1, %s15
      %p97 = scmp.lt.s32.totalorder %s15, 5
      %p98 = pnand %p96, %p97
      %p99 = pneg %p98
      // Predicated region
      $region9: #{tpu_custom_call.1} parent=5 // pred_check
        _
      $region10: #{tpu_custom_call.1} parent=5 // pred_check_branch
        %101 = sbr.rel (%p98) target = $region12
      $region11: #{tpu_custom_call.1} parent=5 // pred_region
        %s102 = ssub.s32 %s15, 1
        // Predicated region
        $region13: #{tpu_custom_call.1} parent=11 // pred_check
          %p103 = pneg %p62
        $region14: #{tpu_custom_call.1} parent=11 // pred_check_branch
          %105 = sbr.rel (%p103) target = $region16
        $region15: #{tpu_custom_call.1} parent=11 // pred_region
          %107 = vsyncadd [#allocation6], 0
          %s109 = sshll.u32 %s1, 4
          %s110 = int_to_ptr.hbm [resolvable:$true] %s109
          %s111 = sshll.u32 [#allocation5], 4
          %s112 = int_to_ptr.vmem [resolvable:$true] %s111
          %114 = dma.hbm_to_vmem [thread:$0]  %s110, 32, %s112, [#allocation6]
        $region16: #{tpu_custom_call.1} parent=11 // pred_fallthru
          _
      $region12: #{tpu_custom_call.1} parent=5 // pred_fallthru
        _
      %p115 = scmp.lt.s32.totalorder %s15, 4
      // Predicated region
      $region17: #{tpu_custom_call.1} parent=5 // pred_check
        %p116 = pneg %p115
      $region18: #{tpu_custom_call.1} parent=5 // pred_check_branch
        %118 = sbr.rel (%p116) target = $region20
      $region19: #{tpu_custom_call.1} parent=5 // pred_region
        // Predicated region
        $region21: #{tpu_custom_call.1} parent=19 // pred_check
          %p119 = pneg %p35
        $region22: #{tpu_custom_call.1} parent=19 // pred_check_branch
          %121 = sbr.rel (%p119) target = $region24
        $region23: #{tpu_custom_call.1} parent=19 // pred_region
          %s122 = sand.u32 %s25, 1
          %s123 = scalar_lea.sflag [#allocation3], %s122
          %s124 = sand.u32 %s25, 1
          %s125 = smul.addr %s124, 512
          %s126 = scalar_lea.vmem [#allocation2], %s125
          %s127 = smul.u32 32, %s15
          %129 = vsyncadd %s123, 0
          %s130 = smul.addr %s127, 2
          %s131 = smul.addr %s130, 8
          %s132 = scalar_lea.hbm %s0, %s131
          %s133 = sshll.u32 %s132, 4
          %s134 = int_to_ptr.hbm [resolvable:$true] %s133
          %s135 = sshll.u32 %s126, 4
          %s136 = int_to_ptr.vmem [resolvable:$true] %s135
          %141 = dma.hbm_to_vmem [thread:$0]  %s134, 8192, %s136, %s123, 256, 256, 16
        $region24: #{tpu_custom_call.1} parent=19 // pred_fallthru
          _
      $region20: #{tpu_custom_call.1} parent=5 // pred_fallthru
        _
      %p142 = scmp.le.s32.totalorder 1, %s15
      %p143 = scmp.lt.s32.totalorder %s15, 5
      %p144 = pnand %p142, %p143
      %p145 = pneg %p144
      // Predicated region
      $region25: #{tpu_custom_call.1} parent=5 // pred_check
        _
      $region26: #{tpu_custom_call.1} parent=5 // pred_check_branch
        %147 = sbr.rel (%p144) target = $region28
      $region27: #{tpu_custom_call.1} parent=5 // pred_region
        %s148 = ssub.s32 %s15, 1
        %s149 = sand.u32 %s28, 1
        %s150 = scalar_lea.sflag [#allocation3], %s149
        %s151 = sand.u32 %s28, 1
        %s152 = smul.addr %s151, 512
        %s153 = scalar_lea.vmem [#allocation2], %s152
        // Predicated region
        $region29: #{tpu_custom_call.1} parent=27 // pred_check
          %p154 = pneg %p41
        $region30: #{tpu_custom_call.1} parent=27 // pred_check_branch
          %156 = sbr.rel (%p154) target = $region32
        $region31: #{tpu_custom_call.1} parent=27 // pred_region
          %158 = dma.done %s150, 8192
        $region32: #{tpu_custom_call.1} parent=27 // pred_fallthru
          _
        // Predicated region
        $region33: #{tpu_custom_call.1} parent=27 // pred_check
          %p159 = pneg %p62
        $region34: #{tpu_custom_call.1} parent=27 // pred_check_branch
          %161 = sbr.rel (%p159) target = $region36
        $region35: #{tpu_custom_call.1} parent=27 // pred_region
          %163 = dma.done [#allocation6], 32
        $region36: #{tpu_custom_call.1} parent=27 // pred_fallthru
          _
        %s164 = sand.u32 %s28, 1
        %s165 = scalar_lea.sflag [#allocation3], %s164
        %s166 = sand.u32 %s28, 1
        %s167 = smul.addr %s166, 512
        %s168 = scalar_lea.vmem [#allocation2], %s167
        %p169 = pneg %p41
        %p170 = pneg %p38
        %p171 = pneg %p62
        %p172 = pneg %p59
        %p173 = pneg %p88
        %p174 = pneg %p85
        %s175 = sand.u32 %s75, 1
        %s176 = scalar_lea.sflag [#allocation4], %s175
        %s177 = sand.u32 %s75, 1
        %s178 = smul.addr %s177, 256
        %s179 = scalar_lea.vmem [#allocation7], %s178
        %s180 = smul.u32 32, %s20
        %s181 = smul.u32 32, %s20
        %v182 = vld [vmem:[%s153] sm:$0xff]
        %v183 = vld [vmem:[%s153 + $0x8] sm:$0xff]
        %v184 = vld [vmem:[%s153 + $0x10] sm:$0xff]
        %v185 = vld [vmem:[%s153 + $0x18] sm:$0xff]
        %v186 = vld [vmem:[%s153 + $0x20] sm:$0xff]
        %v187 = vld [vmem:[%s153 + $0x28] sm:$0xff]
        %v188 = vld [vmem:[%s153 + $0x30] sm:$0xff]
        %v189 = vld [vmem:[%s153 + $0x38] sm:$0xff]
        %v190 = vld [vmem:[%s153 + $0x40] sm:$0xff]
        %v191 = vld [vmem:[%s153 + $0x48] sm:$0xff]
        %v192 = vld [vmem:[%s153 + $0x50] sm:$0xff]
        %v193 = vld [vmem:[%s153 + $0x58] sm:$0xff]
        %v194 = vld [vmem:[%s153 + $0x60] sm:$0xff]
        %v195 = vld [vmem:[%s153 + $0x68] sm:$0xff]
        %v196 = vld [vmem:[%s153 + $0x70] sm:$0xff]
        %v197 = vld [vmem:[%s153 + $0x78] sm:$0xff]
        %v198 = vld [vmem:[%s153 + $0x80] sm:$0xff]
        %v199 = vld [vmem:[%s153 + $0x88] sm:$0xff]
        %v200 = vld [vmem:[%s153 + $0x90] sm:$0xff]
        %v201 = vld [vmem:[%s153 + $0x98] sm:$0xff]
        %v202 = vld [vmem:[%s153 + $0xa0] sm:$0xff]
        %v203 = vld [vmem:[%s153 + $0xa8] sm:$0xff]
        %v204 = vld [vmem:[%s153 + $0xb0] sm:$0xff]
        %v205 = vld [vmem:[%s153 + $0xb8] sm:$0xff]
        %v206 = vld [vmem:[%s153 + $0xc0] sm:$0xff]
        %v207 = vld [vmem:[%s153 + $0xc8] sm:$0xff]
        %v208 = vld [vmem:[%s153 + $0xd0] sm:$0xff]
        %v209 = vld [vmem:[%s153 + $0xd8] sm:$0xff]
        %v210 = vld [vmem:[%s153 + $0xe0] sm:$0xff]
        %v211 = vld [vmem:[%s153 + $0xe8] sm:$0xff]
        %v212 = vld [vmem:[%s153 + $0xf0] sm:$0xff]
        %v213 = vld [vmem:[%s153 + $0xf8] sm:$0xff]
        %v214 = vld [vmem:[%s153 + $0x100] sm:$0xff]
        %v215 = vld [vmem:[%s153 + $0x108] sm:$0xff]
        %v216 = vld [vmem:[%s153 + $0x110] sm:$0xff]
        %v217 = vld [vmem:[%s153 + $0x118] sm:$0xff]
        %v218 = vld [vmem:[%s153 + $0x120] sm:$0xff]
        %v219 = vld [vmem:[%s153 + $0x128] sm:$0xff]
        %v220 = vld [vmem:[%s153 + $0x130] sm:$0xff]
        %v221 = vld [vmem:[%s153 + $0x138] sm:$0xff]
        %v222 = vld [vmem:[%s153 + $0x140] sm:$0xff]
        %v223 = vld [vmem:[%s153 + $0x148] sm:$0xff]
        %v224 = vld [vmem:[%s153 + $0x150] sm:$0xff]
        %v225 = vld [vmem:[%s153 + $0x158] sm:$0xff]
        %v226 = vld [vmem:[%s153 + $0x160] sm:$0xff]
        %v227 = vld [vmem:[%s153 + $0x168] sm:$0xff]
        %v228 = vld [vmem:[%s153 + $0x170] sm:$0xff]
        %v229 = vld [vmem:[%s153 + $0x178] sm:$0xff]
        %v230 = vld [vmem:[%s153 + $0x180] sm:$0xff]
        %v231 = vld [vmem:[%s153 + $0x188] sm:$0xff]
        %v232 = vld [vmem:[%s153 + $0x190] sm:$0xff]
        %v233 = vld [vmem:[%s153 + $0x198] sm:$0xff]
        %v234 = vld [vmem:[%s153 + $0x1a0] sm:$0xff]
        %v235 = vld [vmem:[%s153 + $0x1a8] sm:$0xff]
        %v236 = vld [vmem:[%s153 + $0x1b0] sm:$0xff]
        %v237 = vld [vmem:[%s153 + $0x1b8] sm:$0xff]
        %v238 = vld [vmem:[%s153 + $0x1c0] sm:$0xff]
        %v239 = vld [vmem:[%s153 + $0x1c8] sm:$0xff]
        %v240 = vld [vmem:[%s153 + $0x1d0] sm:$0xff]
        %v241 = vld [vmem:[%s153 + $0x1d8] sm:$0xff]
        %v242 = vld [vmem:[%s153 + $0x1e0] sm:$0xff]
        %v243 = vld [vmem:[%s153 + $0x1e8] sm:$0xff]
        %v244 = vld [vmem:[%s153 + $0x1f0] sm:$0xff]
        %v245 = vld [vmem:[%s153 + $0x1f8] sm:$0xff]
        %v246 = vmul.f32 %v182, %v182
        %v247 = vmul.f32 %v183, %v183
        %v248 = vmul.f32 %v184, %v184
        %v249 = vmul.f32 %v185, %v185
        %v250 = vmul.f32 %v186, %v186
        %v251 = vmul.f32 %v187, %v187
        %v252 = vmul.f32 %v188, %v188
        %v253 = vmul.f32 %v189, %v189
        %v254 = vmul.f32 %v190, %v190
        %v255 = vmul.f32 %v191, %v191
        %v256 = vmul.f32 %v192, %v192
        %v257 = vmul.f32 %v193, %v193
        %v258 = vmul.f32 %v194, %v194
        %v259 = vmul.f32 %v195, %v195
        %v260 = vmul.f32 %v196, %v196
        %v261 = vmul.f32 %v197, %v197
        %v262 = vmul.f32 %v198, %v198
        %v263 = vmul.f32 %v199, %v199
        %v264 = vmul.f32 %v200, %v200
        %v265 = vmul.f32 %v201, %v201
        %v266 = vmul.f32 %v202, %v202
        %v267 = vmul.f32 %v203, %v203
        %v268 = vmul.f32 %v204, %v204
        %v269 = vmul.f32 %v205, %v205
        %v270 = vmul.f32 %v206, %v206
        %v271 = vmul.f32 %v207, %v207
        %v272 = vmul.f32 %v208, %v208
        %v273 = vmul.f32 %v209, %v209
        %v274 = vmul.f32 %v210, %v210
        %v275 = vmul.f32 %v211, %v211
        %v276 = vmul.f32 %v212, %v212
        %v277 = vmul.f32 %v213, %v213
        %v278 = vmul.f32 %v214, %v214
        %v279 = vmul.f32 %v215, %v215
        %v280 = vmul.f32 %v216, %v216
        %v281 = vmul.f32 %v217, %v217
        %v282 = vmul.f32 %v218, %v218
        %v283 = vmul.f32 %v219, %v219
        %v284 = vmul.f32 %v220, %v220
        %v285 = vmul.f32 %v221, %v221
        %v286 = vmul.f32 %v222, %v222
        %v287 = vmul.f32 %v223, %v223
        %v288 = vmul.f32 %v224, %v224
        %v289 = vmul.f32 %v225, %v225
        %v290 = vmul.f32 %v226, %v226
        %v291 = vmul.f32 %v227, %v227
        %v292 = vmul.f32 %v228, %v228
        %v293 = vmul.f32 %v229, %v229
        %v294 = vmul.f32 %v230, %v230
        %v295 = vmul.f32 %v231, %v231
        %v296 = vmul.f32 %v232, %v232
        %v297 = vmul.f32 %v233, %v233
        %v298 = vmul.f32 %v234, %v234
        %v299 = vmul.f32 %v235, %v235
        %v300 = vmul.f32 %v236, %v236
        %v301 = vmul.f32 %v237, %v237
        %v302 = vmul.f32 %v238, %v238
        %v303 = vmul.f32 %v239, %v239
        %v304 = vmul.f32 %v240, %v240
        %v305 = vmul.f32 %v241, %v241
        %v306 = vmul.f32 %v242, %v242
        %v307 = vmul.f32 %v243, %v243
        %v308 = vmul.f32 %v244, %v244
        %v309 = vmul.f32 %v245, %v245
        %v310 = vadd.f32 %v246, %v247
        %311 = vadd.xlane.f32.xlu0 %v310
        %v312 = vpop.xlane.xlu0 %311
        %v313 = vadd.f32 %v248, %v249
        %314 = vadd.xlane.f32.xlu0 %v313
        %v315 = vpop.xlane.xlu0 %314
        %v316 = vadd.f32 %v250, %v251
        %317 = vadd.xlane.f32.xlu0 %v316
        %v318 = vpop.xlane.xlu0 %317
        %v319 = vadd.f32 %v252, %v253
        %320 = vadd.xlane.f32.xlu0 %v319
        %v321 = vpop.xlane.xlu0 %320
        %v322 = vadd.f32 %v254, %v255
        %323 = vadd.xlane.f32.xlu0 %v322
        %v324 = vpop.xlane.xlu0 %323
        %v325 = vadd.f32 %v256, %v257
        %326 = vadd.xlane.f32.xlu0 %v325
        %v327 = vpop.xlane.xlu0 %326
        %v328 = vadd.f32 %v258, %v259
        %329 = vadd.xlane.f32.xlu0 %v328
        %v330 = vpop.xlane.xlu0 %329
        %v331 = vadd.f32 %v260, %v261
        %332 = vadd.xlane.f32.xlu0 %v331
        %v333 = vpop.xlane.xlu0 %332
        %v334 = vadd.f32 %v262, %v263
        %335 = vadd.xlane.f32.xlu0 %v334
        %v336 = vpop.xlane.xlu0 %335
        %v337 = vadd.f32 %v264, %v265
        %338 = vadd.xlane.f32.xlu0 %v337
        %v339 = vpop.xlane.xlu0 %338
        %v340 = vadd.f32 %v266, %v267
        %341 = vadd.xlane.f32.xlu0 %v340
        %v342 = vpop.xlane.xlu0 %341
        %v343 = vadd.f32 %v268, %v269
        %344 = vadd.xlane.f32.xlu0 %v343
        %v345 = vpop.xlane.xlu0 %344
        %v346 = vadd.f32 %v270, %v271
        %347 = vadd.xlane.f32.xlu0 %v346
        %v348 = vpop.xlane.xlu0 %347
        %v349 = vadd.f32 %v272, %v273
        %350 = vadd.xlane.f32.xlu0 %v349
        %v351 = vpop.xlane.xlu0 %350
        %v352 = vadd.f32 %v274, %v275
        %353 = vadd.xlane.f32.xlu0 %v352
        %v354 = vpop.xlane.xlu0 %353
        %v355 = vadd.f32 %v276, %v277
        %356 = vadd.xlane.f32.xlu0 %v355
        %v357 = vpop.xlane.xlu0 %356
        %v358 = vadd.f32 %v278, %v279
        %359 = vadd.xlane.f32.xlu0 %v358
        %v360 = vpop.xlane.xlu0 %359
        %v361 = vadd.f32 %v280, %v281
        %362 = vadd.xlane.f32.xlu0 %v361
        %v363 = vpop.xlane.xlu0 %362
        %v364 = vadd.f32 %v282, %v283
        %365 = vadd.xlane.f32.xlu0 %v364
        %v366 = vpop.xlane.xlu0 %365
        %v367 = vadd.f32 %v284, %v285
        %368 = vadd.xlane.f32.xlu0 %v367
        %v369 = vpop.xlane.xlu0 %368
        %v370 = vadd.f32 %v286, %v287
        %371 = vadd.xlane.f32.xlu0 %v370
        %v372 = vpop.xlane.xlu0 %371
        %v373 = vadd.f32 %v288, %v289
        %374 = vadd.xlane.f32.xlu0 %v373
        %v375 = vpop.xlane.xlu0 %374
        %v376 = vadd.f32 %v290, %v291
        %377 = vadd.xlane.f32.xlu0 %v376
        %v378 = vpop.xlane.xlu0 %377
        %v379 = vadd.f32 %v292, %v293
        %380 = vadd.xlane.f32.xlu0 %v379
        %v381 = vpop.xlane.xlu0 %380
        %v382 = vadd.f32 %v294, %v295
        %383 = vadd.xlane.f32.xlu0 %v382
        %v384 = vpop.xlane.xlu0 %383
        %v385 = vadd.f32 %v296, %v297
        %386 = vadd.xlane.f32.xlu0 %v385
        %v387 = vpop.xlane.xlu0 %386
        %v388 = vadd.f32 %v298, %v299
        %389 = vadd.xlane.f32.xlu0 %v388
        %v390 = vpop.xlane.xlu0 %389
        %v391 = vadd.f32 %v300, %v301
        %392 = vadd.xlane.f32.xlu0 %v391
        %v393 = vpop.xlane.xlu0 %392
        %v394 = vadd.f32 %v302, %v303
        %395 = vadd.xlane.f32.xlu0 %v394
        %v396 = vpop.xlane.xlu0 %395
        %v397 = vadd.f32 %v304, %v305
        %398 = vadd.xlane.f32.xlu0 %v397
        %v399 = vpop.xlane.xlu0 %398
        %v400 = vadd.f32 %v306, %v307
        %401 = vadd.xlane.f32.xlu0 %v400
        %v402 = vpop.xlane.xlu0 %401
        %v403 = vadd.f32 %v308, %v309
        %404 = vadd.xlane.f32.xlu0 %v403
        %v405 = vpop.xlane.xlu0 %404
        %v406 = vrcp.pop 256.0
        %v407 = vmul.f32 256.0, %v406
        %v408 = vsub.f32 1.0, %v407
        %v409 = vmul.f32 %v406, %v408
        %v410 = vadd.f32 %v406, %v409
        %vm411 = vweird.f32 %v406
        %v412 = vsel %vm411, %v406, %v410
        %v413 = vmul.f32 %v312, %v412
        %v414 = vmul.f32 %v315, %v412
        %v415 = vmul.f32 %v318, %v412
        %v416 = vmul.f32 %v321, %v412
        %v417 = vmul.f32 %v324, %v412
        %v418 = vmul.f32 %v327, %v412
        %v419 = vmul.f32 %v330, %v412
        %v420 = vmul.f32 %v333, %v412
        %v421 = vmul.f32 %v336, %v412
        %v422 = vmul.f32 %v339, %v412
        %v423 = vmul.f32 %v342, %v412
        %v424 = vmul.f32 %v345, %v412
        %v425 = vmul.f32 %v348, %v412
        %v426 = vmul.f32 %v351, %v412
        %v427 = vmul.f32 %v354, %v412
        %v428 = vmul.f32 %v357, %v412
        %v429 = vmul.f32 %v360, %v412
        %v430 = vmul.f32 %v363, %v412
        %v431 = vmul.f32 %v366, %v412
        %v432 = vmul.f32 %v369, %v412
        %v433 = vmul.f32 %v372, %v412
        %v434 = vmul.f32 %v375, %v412
        %v435 = vmul.f32 %v378, %v412
        %v436 = vmul.f32 %v381, %v412
        %v437 = vmul.f32 %v384, %v412
        %v438 = vmul.f32 %v387, %v412
        %v439 = vmul.f32 %v390, %v412
        %v440 = vmul.f32 %v393, %v412
        %v441 = vmul.f32 %v396, %v412
        %v442 = vmul.f32 %v399, %v412
        %v443 = vmul.f32 %v402, %v412
        %v444 = vmul.f32 %v405, %v412
        %v445 = vadd.f32 %v413, 1e-05
        %v446 = vadd.f32 %v414, 1e-05
        %v447 = vadd.f32 %v415, 1e-05
        %v448 = vadd.f32 %v416, 1e-05
        %v449 = vadd.f32 %v417, 1e-05
        %v450 = vadd.f32 %v418, 1e-05
        %v451 = vadd.f32 %v419, 1e-05
        %v452 = vadd.f32 %v420, 1e-05
        %v453 = vadd.f32 %v421, 1e-05
        %v454 = vadd.f32 %v422, 1e-05
        %v455 = vadd.f32 %v423, 1e-05
        %v456 = vadd.f32 %v424, 1e-05
        %v457 = vadd.f32 %v425, 1e-05
        %v458 = vadd.f32 %v426, 1e-05
        %v459 = vadd.f32 %v427, 1e-05
        %v460 = vadd.f32 %v428, 1e-05
        %v461 = vadd.f32 %v429, 1e-05
        %v462 = vadd.f32 %v430, 1e-05
        %v463 = vadd.f32 %v431, 1e-05
        %v464 = vadd.f32 %v432, 1e-05
        %v465 = vadd.f32 %v433, 1e-05
        %v466 = vadd.f32 %v434, 1e-05
        %v467 = vadd.f32 %v435, 1e-05
        %v468 = vadd.f32 %v436, 1e-05
        %v469 = vadd.f32 %v437, 1e-05
        %v470 = vadd.f32 %v438, 1e-05
        %v471 = vadd.f32 %v439, 1e-05
        %v472 = vadd.f32 %v440, 1e-05
        %v473 = vadd.f32 %v441, 1e-05
        %v474 = vadd.f32 %v442, 1e-05
        %v475 = vadd.f32 %v443, 1e-05
        %v476 = vadd.f32 %v444, 1e-05
        %v477 = vrsqrt.pop %v445
        %v478 = vmul.f32 %v477, %v445
        %v479 = vmul.f32 %v478, %v477
        %v480 = vmul.f32 0.5, %v479
        %v481 = vsub.f32 1.5, %v480
        %v482 = vmul.f32 %v477, %v481
        %vm483 = vweird.f32 %v445
        %vm484 = vweird.f32 %v477
        %vm485 = vmor %vm483, %vm484
        %v486 = vsel %vm485, %v477, %v482
        %v487 = vrsqrt.pop %v446
        %v488 = vmul.f32 %v487, %v446
        %v489 = vmul.f32 %v488, %v487
        %v490 = vmul.f32 0.5, %v489
        %v491 = vsub.f32 1.5, %v490
        %v492 = vmul.f32 %v487, %v491
        %vm493 = vweird.f32 %v446
        %vm494 = vweird.f32 %v487
        %vm495 = vmor %vm493, %vm494
        %v496 = vsel %vm495, %v487, %v492
        %v497 = vrsqrt.pop %v447
        %v498 = vmul.f32 %v497, %v447
        %v499 = vmul.f32 %v498, %v497
        %v500 = vmul.f32 0.5, %v499
        %v501 = vsub.f32 1.5, %v500
        %v502 = vmul.f32 %v497, %v501
        %vm503 = vweird.f32 %v447
        %vm504 = vweird.f32 %v497
        %vm505 = vmor %vm503, %vm504
        %v506 = vsel %vm505, %v497, %v502
        %v507 = vrsqrt.pop %v448
        %v508 = vmul.f32 %v507, %v448
        %v509 = vmul.f32 %v508, %v507
        %v510 = vmul.f32 0.5, %v509
        %v511 = vsub.f32 1.5, %v510
        %v512 = vmul.f32 %v507, %v511
        %vm513 = vweird.f32 %v448
        %vm514 = vweird.f32 %v507
        %vm515 = vmor %vm513, %vm514
        %v516 = vsel %vm515, %v507, %v512
        %v517 = vrsqrt.pop %v449
        %v518 = vmul.f32 %v517, %v449
        %v519 = vmul.f32 %v518, %v517
        %v520 = vmul.f32 0.5, %v519
        %v521 = vsub.f32 1.5, %v520
        %v522 = vmul.f32 %v517, %v521
        %vm523 = vweird.f32 %v449
        %vm524 = vweird.f32 %v517
        %vm525 = vmor %vm523, %vm524
        %v526 = vsel %vm525, %v517, %v522
        %v527 = vrsqrt.pop %v450
        %v528 = vmul.f32 %v527, %v450
        %v529 = vmul.f32 %v528, %v527
        %v530 = vmul.f32 0.5, %v529
        %v531 = vsub.f32 1.5, %v530
        %v532 = vmul.f32 %v527, %v531
        %vm533 = vweird.f32 %v450
        %vm534 = vweird.f32 %v527
        %vm535 = vmor %vm533, %vm534
        %v536 = vsel %vm535, %v527, %v532
        %v537 = vrsqrt.pop %v451
        %v538 = vmul.f32 %v537, %v451
        %v539 = vmul.f32 %v538, %v537
        %v540 = vmul.f32 0.5, %v539
        %v541 = vsub.f32 1.5, %v540
        %v542 = vmul.f32 %v537, %v541
        %vm543 = vweird.f32 %v451
        %vm544 = vweird.f32 %v537
        %vm545 = vmor %vm543, %vm544
        %v546 = vsel %vm545, %v537, %v542
        %v547 = vrsqrt.pop %v452
        %v548 = vmul.f32 %v547, %v452
        %v549 = vmul.f32 %v548, %v547
        %v550 = vmul.f32 0.5, %v549
        %v551 = vsub.f32 1.5, %v550
        %v552 = vmul.f32 %v547, %v551
        %vm553 = vweird.f32 %v452
        %vm554 = vweird.f32 %v547
        %vm555 = vmor %vm553, %vm554
        %v556 = vsel %vm555, %v547, %v552
        %v557 = vrsqrt.pop %v453
        %v558 = vmul.f32 %v557, %v453
        %v559 = vmul.f32 %v558, %v557
        %v560 = vmul.f32 0.5, %v559
        %v561 = vsub.f32 1.5, %v560
        %v562 = vmul.f32 %v557, %v561
        %vm563 = vweird.f32 %v453
        %vm564 = vweird.f32 %v557
        %vm565 = vmor %vm563, %vm564
        %v566 = vsel %vm565, %v557, %v562
        %v567 = vrsqrt.pop %v454
        %v568 = vmul.f32 %v567, %v454
        %v569 = vmul.f32 %v568, %v567
        %v570 = vmul.f32 0.5, %v569
        %v571 = vsub.f32 1.5, %v570
        %v572 = vmul.f32 %v567, %v571
        %vm573 = vweird.f32 %v454
        %vm574 = vweird.f32 %v567
        %vm575 = vmor %vm573, %vm574
        %v576 = vsel %vm575, %v567, %v572
        %v577 = vrsqrt.pop %v455
        %v578 = vmul.f32 %v577, %v455
        %v579 = vmul.f32 %v578, %v577
        %v580 = vmul.f32 0.5, %v579
        %v581 = vsub.f32 1.5, %v580
        %v582 = vmul.f32 %v577, %v581
        %vm583 = vweird.f32 %v455
        %vm584 = vweird.f32 %v577
        %vm585 = vmor %vm583, %vm584
        %v586 = vsel %vm585, %v577, %v582
        %v587 = vrsqrt.pop %v456
        %v588 = vmul.f32 %v587, %v456
        %v589 = vmul.f32 %v588, %v587
        %v590 = vmul.f32 0.5, %v589
        %v591 = vsub.f32 1.5, %v590
        %v592 = vmul.f32 %v587, %v591
        %vm593 = vweird.f32 %v456
        %vm594 = vweird.f32 %v587
        %vm595 = vmor %vm593, %vm594
        %v596 = vsel %vm595, %v587, %v592
        %v597 = vrsqrt.pop %v457
        %v598 = vmul.f32 %v597, %v457
        %v599 = vmul.f32 %v598, %v597
        %v600 = vmul.f32 0.5, %v599
        %v601 = vsub.f32 1.5, %v600
        %v602 = vmul.f32 %v597, %v601
        %vm603 = vweird.f32 %v457
        %vm604 = vweird.f32 %v597
        %vm605 = vmor %vm603, %vm604
        %v606 = vsel %vm605, %v597, %v602
        %v607 = vrsqrt.pop %v458
        %v608 = vmul.f32 %v607, %v458
        %v609 = vmul.f32 %v608, %v607
        %v610 = vmul.f32 0.5, %v609
        %v611 = vsub.f32 1.5, %v610
        %v612 = vmul.f32 %v607, %v611
        %vm613 = vweird.f32 %v458
        %vm614 = vweird.f32 %v607
        %vm615 = vmor %vm613, %vm614
        %v616 = vsel %vm615, %v607, %v612
        %v617 = vrsqrt.pop %v459
        %v618 = vmul.f32 %v617, %v459
        %v619 = vmul.f32 %v618, %v617
        %v620 = vmul.f32 0.5, %v619
        %v621 = vsub.f32 1.5, %v620
        %v622 = vmul.f32 %v617, %v621
        %vm623 = vweird.f32 %v459
        %vm624 = vweird.f32 %v617
        %vm625 = vmor %vm623, %vm624
        %v626 = vsel %vm625, %v617, %v622
        %v627 = vrsqrt.pop %v460
        %v628 = vmul.f32 %v627, %v460
        %v629 = vmul.f32 %v628, %v627
        %v630 = vmul.f32 0.5, %v629
        %v631 = vsub.f32 1.5, %v630
        %v632 = vmul.f32 %v627, %v631
        %vm633 = vweird.f32 %v460
        %vm634 = vweird.f32 %v627
        %vm635 = vmor %vm633, %vm634
        %v636 = vsel %vm635, %v627, %v632
        %v637 = vrsqrt.pop %v461
        %v638 = vmul.f32 %v637, %v461
        %v639 = vmul.f32 %v638, %v637
        %v640 = vmul.f32 0.5, %v639
        %v641 = vsub.f32 1.5, %v640
        %v642 = vmul.f32 %v637, %v641
        %vm643 = vweird.f32 %v461
        %vm644 = vweird.f32 %v637
        %vm645 = vmor %vm643, %vm644
        %v646 = vsel %vm645, %v637, %v642
        %v647 = vrsqrt.pop %v462
        %v648 = vmul.f32 %v647, %v462
        %v649 = vmul.f32 %v648, %v647
        %v650 = vmul.f32 0.5, %v649
        %v651 = vsub.f32 1.5, %v650
        %v652 = vmul.f32 %v647, %v651
        %vm653 = vweird.f32 %v462
        %vm654 = vweird.f32 %v647
        %vm655 = vmor %vm653, %vm654
        %v656 = vsel %vm655, %v647, %v652
        %v657 = vrsqrt.pop %v463
        %v658 = vmul.f32 %v657, %v463
        %v659 = vmul.f32 %v658, %v657
        %v660 = vmul.f32 0.5, %v659
        %v661 = vsub.f32 1.5, %v660
        %v662 = vmul.f32 %v657, %v661
        %vm663 = vweird.f32 %v463
        %vm664 = vweird.f32 %v657
        %vm665 = vmor %vm663, %vm664
        %v666 = vsel %vm665, %v657, %v662
        %v667 = vrsqrt.pop %v464
        %v668 = vmul.f32 %v667, %v464
        %v669 = vmul.f32 %v668, %v667
        %v670 = vmul.f32 0.5, %v669
        %v671 = vsub.f32 1.5, %v670
        %v672 = vmul.f32 %v667, %v671
        %vm673 = vweird.f32 %v464
        %vm674 = vweird.f32 %v667
        %vm675 = vmor %vm673, %vm674
        %v676 = vsel %vm675, %v667, %v672
        %v677 = vrsqrt.pop %v465
        %v678 = vmul.f32 %v677, %v465
        %v679 = vmul.f32 %v678, %v677
        %v680 = vmul.f32 0.5, %v679
        %v681 = vsub.f32 1.5, %v680
        %v682 = vmul.f32 %v677, %v681
        %vm683 = vweird.f32 %v465
        %vm684 = vweird.f32 %v677
        %vm685 = vmor %vm683, %vm684
        %v686 = vsel %vm685, %v677, %v682
        %v687 = vrsqrt.pop %v466
        %v688 = vmul.f32 %v687, %v466
        %v689 = vmul.f32 %v688, %v687
        %v690 = vmul.f32 0.5, %v689
        %v691 = vsub.f32 1.5, %v690
        %v692 = vmul.f32 %v687, %v691
        %vm693 = vweird.f32 %v466
        %vm694 = vweird.f32 %v687
        %vm695 = vmor %vm693, %vm694
        %v696 = vsel %vm695, %v687, %v692
        %v697 = vrsqrt.pop %v467
        %v698 = vmul.f32 %v697, %v467
        %v699 = vmul.f32 %v698, %v697
        %v700 = vmul.f32 0.5, %v699
        %v701 = vsub.f32 1.5, %v700
        %v702 = vmul.f32 %v697, %v701
        %vm703 = vweird.f32 %v467
        %vm704 = vweird.f32 %v697
        %vm705 = vmor %vm703, %vm704
        %v706 = vsel %vm705, %v697, %v702
        %v707 = vrsqrt.pop %v468
        %v708 = vmul.f32 %v707, %v468
        %v709 = vmul.f32 %v708, %v707
        %v710 = vmul.f32 0.5, %v709
        %v711 = vsub.f32 1.5, %v710
        %v712 = vmul.f32 %v707, %v711
        %vm713 = vweird.f32 %v468
        %vm714 = vweird.f32 %v707
        %vm715 = vmor %vm713, %vm714
        %v716 = vsel %vm715, %v707, %v712
        %v717 = vrsqrt.pop %v469
        %v718 = vmul.f32 %v717, %v469
        %v719 = vmul.f32 %v718, %v717
        %v720 = vmul.f32 0.5, %v719
        %v721 = vsub.f32 1.5, %v720
        %v722 = vmul.f32 %v717, %v721
        %vm723 = vweird.f32 %v469
        %vm724 = vweird.f32 %v717
        %vm725 = vmor %vm723, %vm724
        %v726 = vsel %vm725, %v717, %v722
        %v727 = vrsqrt.pop %v470
        %v728 = vmul.f32 %v727, %v470
        %v729 = vmul.f32 %v728, %v727
        %v730 = vmul.f32 0.5, %v729
        %v731 = vsub.f32 1.5, %v730
        %v732 = vmul.f32 %v727, %v731
        %vm733 = vweird.f32 %v470
        %vm734 = vweird.f32 %v727
        %vm735 = vmor %vm733, %vm734
        %v736 = vsel %vm735, %v727, %v732
        %v737 = vrsqrt.pop %v471
        %v738 = vmul.f32 %v737, %v471
        %v739 = vmul.f32 %v738, %v737
        %v740 = vmul.f32 0.5, %v739
        %v741 = vsub.f32 1.5, %v740
        %v742 = vmul.f32 %v737, %v741
        %vm743 = vweird.f32 %v471
        %vm744 = vweird.f32 %v737
        %vm745 = vmor %vm743, %vm744
        %v746 = vsel %vm745, %v737, %v742
        %v747 = vrsqrt.pop %v472
        %v748 = vmul.f32 %v747, %v472
        %v749 = vmul.f32 %v748, %v747
        %v750 = vmul.f32 0.5, %v749
        %v751 = vsub.f32 1.5, %v750
        %v752 = vmul.f32 %v747, %v751
        %vm753 = vweird.f32 %v472
        %vm754 = vweird.f32 %v747
        %vm755 = vmor %vm753, %vm754
        %v756 = vsel %vm755, %v747, %v752
        %v757 = vrsqrt.pop %v473
        %v758 = vmul.f32 %v757, %v473
        %v759 = vmul.f32 %v758, %v757
        %v760 = vmul.f32 0.5, %v759
        %v761 = vsub.f32 1.5, %v760
        %v762 = vmul.f32 %v757, %v761
        %vm763 = vweird.f32 %v473
        %vm764 = vweird.f32 %v757
        %vm765 = vmor %vm763, %vm764
        %v766 = vsel %vm765, %v757, %v762
        %v767 = vrsqrt.pop %v474
        %v768 = vmul.f32 %v767, %v474
        %v769 = vmul.f32 %v768, %v767
        %v770 = vmul.f32 0.5, %v769
        %v771 = vsub.f32 1.5, %v770
        %v772 = vmul.f32 %v767, %v771
        %vm773 = vweird.f32 %v474
        %vm774 = vweird.f32 %v767
        %vm775 = vmor %vm773, %vm774
        %v776 = vsel %vm775, %v767, %v772
        %v777 = vrsqrt.pop %v475
        %v778 = vmul.f32 %v777, %v475
        %v779 = vmul.f32 %v778, %v777
        %v780 = vmul.f32 0.5, %v779
        %v781 = vsub.f32 1.5, %v780
        %v782 = vmul.f32 %v777, %v781
        %vm783 = vweird.f32 %v475
        %vm784 = vweird.f32 %v777
        %vm785 = vmor %vm783, %vm784
        %v786 = vsel %vm785, %v777, %v782
        %v787 = vrsqrt.pop %v476
        %v788 = vmul.f32 %v787, %v476
        %v789 = vmul.f32 %v788, %v787
        %v790 = vmul.f32 0.5, %v789
        %v791 = vsub.f32 1.5, %v790
        %v792 = vmul.f32 %v787, %v791
        %vm793 = vweird.f32 %v476
        %vm794 = vweird.f32 %v787
        %vm795 = vmor %vm793, %vm794
        %v796 = vsel %vm795, %v787, %v792
        %v797 = vmul.f32 %v182, %v486
        %v798 = vmul.f32 %v183, %v486
        %v799 = vmul.f32 %v184, %v496
        %v800 = vmul.f32 %v185, %v496
        %v801 = vmul.f32 %v186, %v506
        %v802 = vmul.f32 %v187, %v506
        %v803 = vmul.f32 %v188, %v516
        %v804 = vmul.f32 %v189, %v516
        %v805 = vmul.f32 %v190, %v526
        %v806 = vmul.f32 %v191, %v526
        %v807 = vmul.f32 %v192, %v536
        %v808 = vmul.f32 %v193, %v536
        %v809 = vmul.f32 %v194, %v546
        %v810 = vmul.f32 %v195, %v546
        %v811 = vmul.f32 %v196, %v556
        %v812 = vmul.f32 %v197, %v556
        %v813 = vmul.f32 %v198, %v566
        %v814 = vmul.f32 %v199, %v566
        %v815 = vmul.f32 %v200, %v576
        %v816 = vmul.f32 %v201, %v576
        %v817 = vmul.f32 %v202, %v586
        %v818 = vmul.f32 %v203, %v586
        %v819 = vmul.f32 %v204, %v596
        %v820 = vmul.f32 %v205, %v596
        %v821 = vmul.f32 %v206, %v606
        %v822 = vmul.f32 %v207, %v606
        %v823 = vmul.f32 %v208, %v616
        %v824 = vmul.f32 %v209, %v616
        %v825 = vmul.f32 %v210, %v626
        %v826 = vmul.f32 %v211, %v626
        %v827 = vmul.f32 %v212, %v636
        %v828 = vmul.f32 %v213, %v636
        %v829 = vmul.f32 %v214, %v646
        %v830 = vmul.f32 %v215, %v646
        %v831 = vmul.f32 %v216, %v656
        %v832 = vmul.f32 %v217, %v656
        %v833 = vmul.f32 %v218, %v666
        %v834 = vmul.f32 %v219, %v666
        %v835 = vmul.f32 %v220, %v676
        %v836 = vmul.f32 %v221, %v676
        %v837 = vmul.f32 %v222, %v686
        %v838 = vmul.f32 %v223, %v686
        %v839 = vmul.f32 %v224, %v696
        %v840 = vmul.f32 %v225, %v696
        %v841 = vmul.f32 %v226, %v706
        %v842 = vmul.f32 %v227, %v706
        %v843 = vmul.f32 %v228, %v716
        %v844 = vmul.f32 %v229, %v716
        %v845 = vmul.f32 %v230, %v726
        %v846 = vmul.f32 %v231, %v726
        %v847 = vmul.f32 %v232, %v736
        %v848 = vmul.f32 %v233, %v736
        %v849 = vmul.f32 %v234, %v746
        %v850 = vmul.f32 %v235, %v746
        %v851 = vmul.f32 %v236, %v756
        %v852 = vmul.f32 %v237, %v756
        %v853 = vmul.f32 %v238, %v766
        %v854 = vmul.f32 %v239, %v766
        %v855 = vmul.f32 %v240, %v776
        %v856 = vmul.f32 %v241, %v776
        %v857 = vmul.f32 %v242, %v786
        %v858 = vmul.f32 %v243, %v786
        %v859 = vmul.f32 %v244, %v796
        %v860 = vmul.f32 %v245, %v796
        %v861 = vld [vmem:[#allocation5] sm:$0x3]
        %v863 = vperm.slane %v861, 0
        %v864 = vperm.slane %v861, 1
        %v867 = vmul.f32 %v797, %v863
        %v868 = vmul.f32 %v798, %v864
        %v869 = vmul.f32 %v799, %v863
        %v870 = vmul.f32 %v800, %v864
        %v871 = vmul.f32 %v801, %v863
        %v872 = vmul.f32 %v802, %v864
        %v873 = vmul.f32 %v803, %v863
        %v874 = vmul.f32 %v804, %v864
        %v875 = vmul.f32 %v805, %v863
        %v876 = vmul.f32 %v806, %v864
        %v877 = vmul.f32 %v807, %v863
        %v878 = vmul.f32 %v808, %v864
        %v879 = vmul.f32 %v809, %v863
        %v880 = vmul.f32 %v810, %v864
        %v881 = vmul.f32 %v811, %v863
        %v882 = vmul.f32 %v812, %v864
        %v883 = vmul.f32 %v813, %v863
        %v884 = vmul.f32 %v814, %v864
        %v885 = vmul.f32 %v815, %v863
        %v886 = vmul.f32 %v816, %v864
        %v887 = vmul.f32 %v817, %v863
        %v888 = vmul.f32 %v818, %v864
        %v889 = vmul.f32 %v819, %v863
        %v890 = vmul.f32 %v820, %v864
        %v891 = vmul.f32 %v821, %v863
        %v892 = vmul.f32 %v822, %v864
        %v893 = vmul.f32 %v823, %v863
        %v894 = vmul.f32 %v824, %v864
        %v895 = vmul.f32 %v825, %v863
        %v896 = vmul.f32 %v826, %v864
        %v897 = vmul.f32 %v827, %v863
        %v898 = vmul.f32 %v828, %v864
        %v899 = vmul.f32 %v829, %v863
        %v900 = vmul.f32 %v830, %v864
        %v901 = vmul.f32 %v831, %v863
        %v902 = vmul.f32 %v832, %v864
        %v903 = vmul.f32 %v833, %v863
        %v904 = vmul.f32 %v834, %v864
        %v905 = vmul.f32 %v835, %v863
        %v906 = vmul.f32 %v836, %v864
        %v907 = vmul.f32 %v837, %v863
        %v908 = vmul.f32 %v838, %v864
        %v909 = vmul.f32 %v839, %v863
        %v910 = vmul.f32 %v840, %v864
        %v911 = vmul.f32 %v841, %v863
        %v912 = vmul.f32 %v842, %v864
        %v913 = vmul.f32 %v843, %v863
        %v914 = vmul.f32 %v844, %v864
        %v915 = vmul.f32 %v845, %v863
        %v916 = vmul.f32 %v846, %v864
        %v917 = vmul.f32 %v847, %v863
        %v918 = vmul.f32 %v848, %v864
        %v919 = vmul.f32 %v849, %v863
        %v920 = vmul.f32 %v850, %v864
        %v921 = vmul.f32 %v851, %v863
        %v922 = vmul.f32 %v852, %v864
        %v923 = vmul.f32 %v853, %v863
        %v924 = vmul.f32 %v854, %v864
        %v925 = vmul.f32 %v855, %v863
        %v926 = vmul.f32 %v856, %v864
        %v927 = vmul.f32 %v857, %v863
        %v928 = vmul.f32 %v858, %v864
        %v929 = vmul.f32 %v859, %v863
        %v930 = vmul.f32 %v860, %v864
        %v931 = vpack.c.bf16 %v868, %v867
        %v932 = vpack.c.bf16 %v870, %v869
        %v933 = vpack.c.bf16 %v872, %v871
        %v934 = vpack.c.bf16 %v874, %v873
        %v935 = vpack.c.bf16 %v876, %v875
        %v936 = vpack.c.bf16 %v878, %v877
        %v937 = vpack.c.bf16 %v880, %v879
        %v938 = vpack.c.bf16 %v882, %v881
        %v939 = vpack.c.bf16 %v884, %v883
        %v940 = vpack.c.bf16 %v886, %v885
        %v941 = vpack.c.bf16 %v888, %v887
        %v942 = vpack.c.bf16 %v890, %v889
        %v943 = vpack.c.bf16 %v892, %v891
        %v944 = vpack.c.bf16 %v894, %v893
        %v945 = vpack.c.bf16 %v896, %v895
        %v946 = vpack.c.bf16 %v898, %v897
        %v947 = vpack.c.bf16 %v900, %v899
        %v948 = vpack.c.bf16 %v902, %v901
        %v949 = vpack.c.bf16 %v904, %v903
        %v950 = vpack.c.bf16 %v906, %v905
        %v951 = vpack.c.bf16 %v908, %v907
        %v952 = vpack.c.bf16 %v910, %v909
        %v953 = vpack.c.bf16 %v912, %v911
        %v954 = vpack.c.bf16 %v914, %v913
        %v955 = vpack.c.bf16 %v916, %v915
        %v956 = vpack.c.bf16 %v918, %v917
        %v957 = vpack.c.bf16 %v920, %v919
        %v958 = vpack.c.bf16 %v922, %v921
        %v959 = vpack.c.bf16 %v924, %v923
        %v960 = vpack.c.bf16 %v926, %v925
        %v961 = vpack.c.bf16 %v928, %v927
        %v962 = vpack.c.bf16 %v930, %v929
        %963 = vst [vmem:[%s179] sm:$0xff] %v931
        %964 = vst [vmem:[%s179 + $0x8] sm:$0xff] %v932
        %965 = vst [vmem:[%s179 + $0x10] sm:$0xff] %v933
        %966 = vst [vmem:[%s179 + $0x18] sm:$0xff] %v934
        %967 = vst [vmem:[%s179 + $0x20] sm:$0xff] %v935
        %968 = vst [vmem:[%s179 + $0x28] sm:$0xff] %v936
        %969 = vst [vmem:[%s179 + $0x30] sm:$0xff] %v937
        %970 = vst [vmem:[%s179 + $0x38] sm:$0xff] %v938
        %971 = vst [vmem:[%s179 + $0x40] sm:$0xff] %v939
        %972 = vst [vmem:[%s179 + $0x48] sm:$0xff] %v940
        %973 = vst [vmem:[%s179 + $0x50] sm:$0xff] %v941
        %974 = vst [vmem:[%s179 + $0x58] sm:$0xff] %v942
        %975 = vst [vmem:[%s179 + $0x60] sm:$0xff] %v943
        %976 = vst [vmem:[%s179 + $0x68] sm:$0xff] %v944
        %977 = vst [vmem:[%s179 + $0x70] sm:$0xff] %v945
        %978 = vst [vmem:[%s179 + $0x78] sm:$0xff] %v946
        %979 = vst [vmem:[%s179 + $0x80] sm:$0xff] %v947
        %980 = vst [vmem:[%s179 + $0x88] sm:$0xff] %v948
        %981 = vst [vmem:[%s179 + $0x90] sm:$0xff] %v949
        %982 = vst [vmem:[%s179 + $0x98] sm:$0xff] %v950
        %983 = vst [vmem:[%s179 + $0xa0] sm:$0xff] %v951
        %984 = vst [vmem:[%s179 + $0xa8] sm:$0xff] %v952
        %985 = vst [vmem:[%s179 + $0xb0] sm:$0xff] %v953
        %986 = vst [vmem:[%s179 + $0xb8] sm:$0xff] %v954
        %987 = vst [vmem:[%s179 + $0xc0] sm:$0xff] %v955
        %988 = vst [vmem:[%s179 + $0xc8] sm:$0xff] %v956
        %989 = vst [vmem:[%s179 + $0xd0] sm:$0xff] %v957
        %990 = vst [vmem:[%s179 + $0xd8] sm:$0xff] %v958
        %991 = vst [vmem:[%s179 + $0xe0] sm:$0xff] %v959
        %992 = vst [vmem:[%s179 + $0xe8] sm:$0xff] %v960
        %993 = vst [vmem:[%s179 + $0xf0] sm:$0xff] %v961
        %994 = vst [vmem:[%s179 + $0xf8] sm:$0xff] %v962
        %s995 = sand.u32 %s75, 1
        %s996 = scalar_lea.sflag [#allocation4], %s995
        %s997 = sand.u32 %s75, 1
        %s998 = smul.addr %s997, 256
        %s999 = scalar_lea.vmem [#allocation7], %s998
        // Predicated region
        $region37: #{tpu_custom_call.1} parent=27 // pred_check
          %p1000 = pneg %p85
        $region38: #{tpu_custom_call.1} parent=27 // pred_check_branch
          %1002 = sbr.rel (%p1000) target = $region40
        $region39: #{tpu_custom_call.1} parent=27 // pred_region
          %s1003 = smul.u32 32, %s20
          %1005 = vsyncadd %s996, 0
          %s1006 = smul.addr %s1003, 2
          %s1007 = smul.addr %s1006, 4
          %s1008 = scalar_lea.hbm %s2, %s1007
          %s1009 = sshll.u32 %s999, 4
          %s1010 = int_to_ptr.vmem [resolvable:$true] %s1009
          %s1011 = sshll.u32 %s1008, 4
          %s1012 = int_to_ptr.hbm [resolvable:$true] %s1011
          %1017 = dma.vmem_to_hbm [thread:$0]  %s1010, 4096, %s1012, %s996, 128, 128, 8
        $region40: #{tpu_custom_call.1} parent=27 // pred_fallthru
          _
      $region28: #{tpu_custom_call.1} parent=5 // pred_fallthru
        _
      %p1018 = scmp.le.s32.totalorder 2, %s15
      // Predicated region
      $region41: #{tpu_custom_call.1} parent=5 // pred_check
        %p1019 = pneg %p1018
      $region42: #{tpu_custom_call.1} parent=5 // pred_check_branch
        %1021 = sbr.rel (%p1019) target = $region44
      $region43: #{tpu_custom_call.1} parent=5 // pred_region
        %s1022 = ssub.s32 %s15, 2
        // Predicated region
        $region45: #{tpu_custom_call.1} parent=43 // pred_check
          %p1023 = pneg %p91
        $region46: #{tpu_custom_call.1} parent=43 // pred_check_branch
          %1025 = sbr.rel (%p1023) target = $region48
        $region47: #{tpu_custom_call.1} parent=43 // pred_region
          %s1026 = sand.u32 %s76, 1
          %s1027 = scalar_lea.sflag [#allocation4], %s1026
          %s1028 = sand.u32 %s76, 1
          %s1029 = smul.addr %s1028, 256
          %s1030 = scalar_lea.vmem [#allocation7], %s1029
          %1032 = dma.done %s1027, 4096
        $region48: #{tpu_custom_call.1} parent=43 // pred_fallthru
          _
      $region44: #{tpu_custom_call.1} parent=5 // pred_fallthru
        _
    $region6: #{tpu_custom_call.1} parent=1 // loop_footer
      %s19 = sadd.s32 1, %s15
    $region7: #{tpu_custom_call.1} parent=1 // loop_footer_branch
      %14 = sbr.rel target = $region3
    $region8: #{tpu_custom_call.1} parent=1 // loop_exit
      _
    %1033 = vsyncpa [#allocation3], 1
    %s1034 = scalar_lea.sflag [#allocation3], 1
    %1035 = vsyncpa %s1034, 1
    %1036 = vsyncpa [#allocation6], 1
    %1037 = vsyncpa [#allocation4], 1
    %s1038 = scalar_lea.sflag [#allocation4], 1
    %1039 = vsyncpa %s1038, 1

</llo_original>
